<compile_context>
chip_gen: v7x
topology: tpu7x:2x2x1
jax: 0.10.0
libtpu: 0.0.40
codegen_flags: <defaults>
</compile_context>

<pallas_src>
import functools

import jax
import jax.numpy as jnp
from jax.experimental import pallas as pl
from jax.experimental.pallas import tpu as pltpu


def wsconv2d_kernel(x_ref, w_ref, b_ref, m_ref, o_ref, rhs_ref, *,
                    H, W, Cin, Cin_pad, Cout, K, pad):
    """One block of Nb images per grid step.

    x_ref  : (Nb, Cin, H*W)        lane-dense input block
    w_ref  : (Cout, K*K*Cin_pad)   WS-scaled weights, row = (kh*K+kw)*Cin_pad + c
    b_ref  : (Cout, 1)             bias (f32)
    m_ref  : (K*K, H*W)            0/1 halo masks per tap
    o_ref  : (Nb, Cout, H*W)       lane-dense output block
    rhs_ref: (K*K*Cin_pad, H*W)    VMEM scratch: stacked matmul RHS (reused per image)
    """
    HW = H * W
    Nb = x_ref.shape[0]

    # Grid-invariant values: load/build once, outside the unrolled loops.
    w = w_ref[...]                                  # (Cout, K*K*Cin_pad)
    bias = b_ref[...].astype(jnp.float32)           # (Cout, 1)
    masks = m_ref[...]                               # (K*K, H*W)
    zpad = (jnp.zeros((Cin_pad - Cin, HW), dtype=x_ref.dtype)
            if Cin_pad > Cin else None)

    for b in range(Nb):                              # static unroll, Nb is small
        xb = x_ref[b]                                # (Cin, H*W)
        for kh in range(K):
            for kw in range(K):
                t = kh * K + kw
                d = (kh - pad) * W + (kw - pad)      # flat shift of this tap
                if d == 0:
                    piece = xb
                else:
                    # rolled[p] = xb[p + d]; the halo mask zeroes positions
                    # where the window would have read the zero padding
                    # (i.e. where the roll wrapped around the image).
                    piece = pltpu.roll(xb, shift=(-d) % HW, axis=1)
                    piece = piece * masks[t:t + 1, :]
                if zpad is not None:
                    # Carry the sublane-padding zero rows inside the stored
                    # block so the scratch store stays 8-row aligned and no
                    # separate zero-init pass is ever needed.
                    piece = jnp.concatenate([piece, zpad], axis=0)
                rhs_ref[t * Cin_pad:(t + 1) * Cin_pad, :] = piece

        # One MXU matmul per image: (Cout, KKCp) @ (KKCp, H*W), f32 accumulate.
        acc = jnp.dot(w, rhs_ref[...], preferred_element_type=jnp.float32)
        o_ref[b] = (acc + bias).astype(o_ref.dtype)


def wsconv2d(x_nchw, weight_oihw, bias, *, stride=1, padding=1,
             images_per_step=None):
    """Forward of WSConv2d: conv2d(x * scale, W) + b, scale = sqrt(2/(Cin*K^2))."""
    # TODO(synk): stride != 1 not implemented (module default stride=1 assumed).
    # TODO(synk): production-sized H*W / Cin need an extra spatial-tile grid axis
    #             (double-buffered blocks sized for v7x's 64 MiB VMEM, <= ~24 MiB)
    #             instead of one whole image per matmul; don't materialize the
    #             full K*K*Cin im2col at large Cin.
    assert stride == 1, "only stride=1 is implemented"
    N, Cin, H, W = x_nchw.shape
    Cout, Cin_w, K, K2 = weight_oihw.shape
    assert Cin == Cin_w and K == K2
    assert 2 * padding == K - 1, "only 'same' conv (2*padding == K-1) is implemented"

    HW = H * W
    dtype = x_nchw.dtype
    itemsize = jnp.dtype(dtype).itemsize

    # Sublane packing of the per-tap channel block: 8 rows (f32) / 16 (bf16).
    sub = max(8, 32 // itemsize)
    Cin_pad = ((Cin + sub - 1) // sub) * sub

    # Fold the WS scale into the weights once, in f32, then lay them out as
    # (Cout, K*K*Cin_pad) with zero rows for the padded channels.
    scale = (2.0 / (Cin * K * K)) ** 0.5
    w = weight_oihw.astype(jnp.float32) * scale
    w = jnp.transpose(w, (0, 2, 3, 1))                      # (Cout, K, K, Cin)
    w = jnp.pad(w, ((0, 0), (0, 0), (0, 0), (0, Cin_pad - Cin)))
    w2d = w.reshape(Cout, K * K * Cin_pad).astype(dtype)
    b2 = bias.reshape(Cout, 1).astype(jnp.float32)

    # Lane-dense input: (N, Cin, H*W) is a contiguous reshape of NCHW.
    x2 = x_nchw.reshape(N, Cin, HW)

    # 0/1 halo masks per tap: zero where the rolled window would wrap around
    # the image border (i.e. where the zero-padded input would be zero).
    hh = jnp.arange(H, dtype=jnp.int32).reshape(H, 1)
    ww = jnp.arange(W, dtype=jnp.int32).reshape(1, W)
    rows = []
    for kh in range(K):
        for kw in range(K):
            dh, dw = kh - padding, kw - padding
            valid = ((hh + dh >= 0) & (hh + dh < H) &
                     (ww + dw >= 0) & (ww + dw < W))
            rows.append(valid.reshape(HW))
    masks = jnp.stack(rows, axis=0).astype(dtype)           # (K*K, H*W)

    # Images per grid step: amortize per-step overhead (single-TC v5e/v6e)
    # while keeping >= 2 parallel steps so both v7x TensorCores get work.
    if images_per_step is None:
        images_per_step = 1
        if N > 1:
            for nb in range(min(N // 2, 8), 0, -1):
                if N % nb == 0:
                    images_per_step = nb
                    break
    Nb = images_per_step
    assert N % Nb == 0, "images_per_step must divide the batch"

    kernel = functools.partial(
        wsconv2d_kernel,
        H=H, W=W, Cin=Cin, Cin_pad=Cin_pad, Cout=Cout, K=K, pad=padding,
    )

    cost = pl.CostEstimate(
        flops=2 * N * H * W * Cin * Cout * K * K,
        transcendentals=0,
        bytes_accessed=((x2.size + w2d.size + masks.size + N * Cout * HW) * itemsize
                        + b2.size * 4),
    )

    out_flat = pl.pallas_call(
        kernel,
        out_shape=jax.ShapeDtypeStruct((N, Cout, HW), dtype),
        grid=(N // Nb,),
        in_specs=[
            pl.BlockSpec((Nb, Cin, HW), lambda n: (n, 0, 0)),
            pl.BlockSpec((Cout, K * K * Cin_pad), lambda n: (0, 0)),
            pl.BlockSpec((Cout, 1), lambda n: (0, 0)),
            pl.BlockSpec((K * K, HW), lambda n: (0, 0)),
        ],
        out_specs=pl.BlockSpec((Nb, Cout, HW), lambda n: (n, 0, 0)),
        scratch_shapes=[pltpu.VMEM((K * K * Cin_pad, HW), dtype)],
        compiler_params=pltpu.CompilerParams(
            dimension_semantics=("parallel",),
        ),
        cost_estimate=cost,
    )(x2, w2d, b2, masks)

    # (N, Cout, H*W) -> (N, Cout, H, W): contiguous reshape; this IS NCHW.
    return out_flat.reshape(N, Cout, H, W)


if __name__ == "__main__":
    key = jax.random.PRNGKey(0)
    kx, kw = jax.random.split(key)

    # Module config: in_channels=4, out_channels=8, kernel_size=3, stride=1, padding=1
    N, Cin, H, W = 2, 4, 16, 16
    Cout, K = 8, 3

    x = jax.random.normal(kx, (N, Cin, H, W), dtype=jnp.float32)
    # nn.init.normal_(self.conv.weight); nn.init.zeros_(self.bias)
    weight = jax.random.normal(kw, (Cout, Cin, K, K), dtype=jnp.float32)
    bias = jnp.zeros((Cout,), dtype=jnp.float32)

    out = wsconv2d(x, weight, bias)
    out = jax.block_until_ready(out)

    # Cross-check against the XLA conv reference (same semantics as torch Conv2d).
    scale = (2.0 / (Cin * K * K)) ** 0.5
    ref = jax.lax.conv_general_dilated(
        x * scale, weight,
        window_strides=(1, 1),
        padding=((1, 1), (1, 1)),
        dimension_numbers=("NCHW", "OIHW", "NCHW"),
    ) + bias.reshape(1, Cout, 1, 1)

    assert out.shape == (N, Cout, H, W)
    assert jnp.allclose(out, ref, atol=1e-4, rtol=1e-4), "mismatch vs reference conv"

    print("KERNEL_OK")
</pallas_src>

<mosaic_0001>
module attributes {stable_mosaic.version = 11 : i64} {
  func.func @wsconv2d_kernel(%arg0: i32, %arg1: memref<1x4x256xf32, #tpu.memory_space<vmem>>, %arg2: memref<8x72xf32, #tpu.memory_space<vmem>>, %arg3: memref<8x1xf32, #tpu.memory_space<vmem>>, %arg4: memref<9x256xf32, #tpu.memory_space<vmem>>, %arg5: memref<1x8x256xf32, #tpu.memory_space<vmem>>, %arg6: memref<72x256xf32, #tpu.memory_space<vmem>>) attributes {dimension_semantics = [#tpu.dimension_semantics<parallel>], iteration_bounds = array<i64: 2>, scalar_prefetch = 0 : i64, scratch_operands = 1 : i64, tpu.core_type = #tpu.core_type<tc>, window_params = [{transform_indices = @transform_0, window_bounds = array<i64: 1, 4, 256>}, {pipeline_mode = #tpu.pipeline_mode<synchronous>, transform_indices = @transform_1, window_bounds = array<i64: 8, 72>}, {pipeline_mode = #tpu.pipeline_mode<synchronous>, transform_indices = @transform_2, window_bounds = array<i64: 8, 1>}, {pipeline_mode = #tpu.pipeline_mode<synchronous>, transform_indices = @transform_3, window_bounds = array<i64: 9, 256>}, {transform_indices = @transform_4, window_bounds = array<i64: 1, 8, 256>}]} {
    %c0 = arith.constant 0 : index
    %c0_0 = arith.constant 0 : index
    %0 = vector.load %arg2[%c0, %c0_0] : memref<8x72xf32, #tpu.memory_space<vmem>>, vector<8x72xf32>
    %c0_1 = arith.constant 0 : index
    %c0_2 = arith.constant 0 : index
    %1 = vector.load %arg3[%c0_1, %c0_2] : memref<8x1xf32, #tpu.memory_space<vmem>>, vector<8x1xf32>
    %c0_3 = arith.constant 0 : index
    %c0_4 = arith.constant 0 : index
    %2 = vector.load %arg4[%c0_3, %c0_4] : memref<9x256xf32, #tpu.memory_space<vmem>>, vector<9x256xf32>
    %cst = arith.constant 0.000000e+00 : f32
    %3 = vector.broadcast %cst : f32 to vector<4x256xf32>
    %c0_5 = arith.constant 0 : index
    %c0_6 = arith.constant 0 : index
    %c0_7 = arith.constant 0 : index
    %4 = vector.load %arg1[%c0_5, %c0_6, %c0_7] : memref<1x4x256xf32, #tpu.memory_space<vmem>>, vector<1x4x256xf32>
    %5 = vector.shape_cast %4 : vector<1x4x256xf32> to vector<4x256xf32>
    %c17_i32 = arith.constant 17 : i32
    %6 = tpu.dynamic_rotate %5 by %c17_i32 dim 1 : vector<4x256xf32>, i32 -> vector<4x256xf32>
    %7 = vector.extract_strided_slice %2 {offsets = [0, 0], sizes = [1, 256], strides = [1, 1]} : vector<9x256xf32> to vector<1x256xf32>
    %8 = vector.broadcast %7 : vector<1x256xf32> to vector<4x256xf32>
    %9 = arith.mulf %6, %8 : vector<4x256xf32>
    %10 = tpu.concatenate %9, %3 in 0 : vector<4x256xf32>, vector<4x256xf32> -> vector<8x256xf32>
    %c0_8 = arith.constant 0 : index
    %c0_9 = arith.constant 0 : index
    %11 = vector.load %arg6[%c0_8, %c0_9] : memref<72x256xf32, #tpu.memory_space<vmem>>, vector<8x256xf32>
    tpu.vector_store %arg6[%c0_8, %c0_9], %10 {strides = array<i32>} : memref<72x256xf32, #tpu.memory_space<vmem>>, vector<8x256xf32>,
    %c16_i32 = arith.constant 16 : i32
    %12 = tpu.dynamic_rotate %5 by %c16_i32 dim 1 : vector<4x256xf32>, i32 -> vector<4x256xf32>
    %13 = vector.extract_strided_slice %2 {offsets = [1, 0], sizes = [1, 256], strides = [1, 1]} : vector<9x256xf32> to vector<1x256xf32>
    %14 = vector.broadcast %13 : vector<1x256xf32> to vector<4x256xf32>
    %15 = arith.mulf %12, %14 : vector<4x256xf32>
    %16 = tpu.concatenate %15, %3 in 0 : vector<4x256xf32>, vector<4x256xf32> -> vector<8x256xf32>
    %c8 = arith.constant 8 : index
    %c0_10 = arith.constant 0 : index
    %17 = vector.load %arg6[%c8, %c0_10] : memref<72x256xf32, #tpu.memory_space<vmem>>, vector<8x256xf32>
    tpu.vector_store %arg6[%c8, %c0_10], %16 {strides = array<i32>} : memref<72x256xf32, #tpu.memory_space<vmem>>, vector<8x256xf32>,
    %c15_i32 = arith.constant 15 : i32
    %18 = tpu.dynamic_rotate %5 by %c15_i32 dim 1 : vector<4x256xf32>, i32 -> vector<4x256xf32>
    %19 = vector.extract_strided_slice %2 {offsets = [2, 0], sizes = [1, 256], strides = [1, 1]} : vector<9x256xf32> to vector<1x256xf32>
    %20 = vector.broadcast %19 : vector<1x256xf32> to vector<4x256xf32>
    %21 = arith.mulf %18, %20 : vector<4x256xf32>
    %22 = tpu.concatenate %21, %3 in 0 : vector<4x256xf32>, vector<4x256xf32> -> vector<8x256xf32>
    %c16 = arith.constant 16 : index
    %c0_11 = arith.constant 0 : index
    %23 = vector.load %arg6[%c16, %c0_11] : memref<72x256xf32, #tpu.memory_space<vmem>>, vector<8x256xf32>
    tpu.vector_store %arg6[%c16, %c0_11], %22 {strides = array<i32>} : memref<72x256xf32, #tpu.memory_space<vmem>>, vector<8x256xf32>,
    %c1_i32 = arith.constant 1 : i32
    %24 = tpu.dynamic_rotate %5 by %c1_i32 dim 1 : vector<4x256xf32>, i32 -> vector<4x256xf32>
    %25 = vector.extract_strided_slice %2 {offsets = [3, 0], sizes = [1, 256], strides = [1, 1]} : vector<9x256xf32> to vector<1x256xf32>
    %26 = vector.broadcast %25 : vector<1x256xf32> to vector<4x256xf32>
    %27 = arith.mulf %24, %26 : vector<4x256xf32>
    %28 = tpu.concatenate %27, %3 in 0 : vector<4x256xf32>, vector<4x256xf32> -> vector<8x256xf32>
    %c24 = arith.constant 24 : index
    %c0_12 = arith.constant 0 : index
    %29 = vector.load %arg6[%c24, %c0_12] : memref<72x256xf32, #tpu.memory_space<vmem>>, vector<8x256xf32>
    tpu.vector_store %arg6[%c24, %c0_12], %28 {strides = array<i32>} : memref<72x256xf32, #tpu.memory_space<vmem>>, vector<8x256xf32>,
    %30 = tpu.concatenate %5, %3 in 0 : vector<4x256xf32>, vector<4x256xf32> -> vector<8x256xf32>
    %c32 = arith.constant 32 : index
    %c0_13 = arith.constant 0 : index
    %31 = vector.load %arg6[%c32, %c0_13] : memref<72x256xf32, #tpu.memory_space<vmem>>, vector<8x256xf32>
    tpu.vector_store %arg6[%c32, %c0_13], %30 {strides = array<i32>} : memref<72x256xf32, #tpu.memory_space<vmem>>, vector<8x256xf32>,
    %c255_i32 = arith.constant 255 : i32
    %32 = tpu.dynamic_rotate %5 by %c255_i32 dim 1 : vector<4x256xf32>, i32 -> vector<4x256xf32>
    %33 = vector.extract_strided_slice %2 {offsets = [5, 0], sizes = [1, 256], strides = [1, 1]} : vector<9x256xf32> to vector<1x256xf32>
    %34 = vector.broadcast %33 : vector<1x256xf32> to vector<4x256xf32>
    %35 = arith.mulf %32, %34 : vector<4x256xf32>
    %36 = tpu.concatenate %35, %3 in 0 : vector<4x256xf32>, vector<4x256xf32> -> vector<8x256xf32>
    %c40 = arith.constant 40 : index
    %c0_14 = arith.constant 0 : index
    %37 = vector.load %arg6[%c40, %c0_14] : memref<72x256xf32, #tpu.memory_space<vmem>>, vector<8x256xf32>
    tpu.vector_store %arg6[%c40, %c0_14], %36 {strides = array<i32>} : memref<72x256xf32, #tpu.memory_space<vmem>>, vector<8x256xf32>,
    %c241_i32 = arith.constant 241 : i32
    %38 = tpu.dynamic_rotate %5 by %c241_i32 dim 1 : vector<4x256xf32>, i32 -> vector<4x256xf32>
    %39 = vector.extract_strided_slice %2 {offsets = [6, 0], sizes = [1, 256], strides = [1, 1]} : vector<9x256xf32> to vector<1x256xf32>
    %40 = vector.broadcast %39 : vector<1x256xf32> to vector<4x256xf32>
    %41 = arith.mulf %38, %40 : vector<4x256xf32>
    %42 = tpu.concatenate %41, %3 in 0 : vector<4x256xf32>, vector<4x256xf32> -> vector<8x256xf32>
    %c48 = arith.constant 48 : index
    %c0_15 = arith.constant 0 : index
    %43 = vector.load %arg6[%c48, %c0_15] : memref<72x256xf32, #tpu.memory_space<vmem>>, vector<8x256xf32>
    tpu.vector_store %arg6[%c48, %c0_15], %42 {strides = array<i32>} : memref<72x256xf32, #tpu.memory_space<vmem>>, vector<8x256xf32>,
    %c240_i32 = arith.constant 240 : i32
    %44 = tpu.dynamic_rotate %5 by %c240_i32 dim 1 : vector<4x256xf32>, i32 -> vector<4x256xf32>
    %45 = vector.extract_strided_slice %2 {offsets = [7, 0], sizes = [1, 256], strides = [1, 1]} : vector<9x256xf32> to vector<1x256xf32>
    %46 = vector.broadcast %45 : vector<1x256xf32> to vector<4x256xf32>
    %47 = arith.mulf %44, %46 : vector<4x256xf32>
    %48 = tpu.concatenate %47, %3 in 0 : vector<4x256xf32>, vector<4x256xf32> -> vector<8x256xf32>
    %c56 = arith.constant 56 : index
    %c0_16 = arith.constant 0 : index
    %49 = vector.load %arg6[%c56, %c0_16] : memref<72x256xf32, #tpu.memory_space<vmem>>, vector<8x256xf32>
    tpu.vector_store %arg6[%c56, %c0_16], %48 {strides = array<i32>} : memref<72x256xf32, #tpu.memory_space<vmem>>, vector<8x256xf32>,
    %c239_i32 = arith.constant 239 : i32
    %50 = tpu.dynamic_rotate %5 by %c239_i32 dim 1 : vector<4x256xf32>, i32 -> vector<4x256xf32>
    %51 = vector.extract_strided_slice %2 {offsets = [8, 0], sizes = [1, 256], strides = [1, 1]} : vector<9x256xf32> to vector<1x256xf32>
    %52 = vector.broadcast %51 : vector<1x256xf32> to vector<4x256xf32>
    %53 = arith.mulf %50, %52 : vector<4x256xf32>
    %54 = tpu.concatenate %53, %3 in 0 : vector<4x256xf32>, vector<4x256xf32> -> vector<8x256xf32>
    %c64 = arith.constant 64 : index
    %c0_17 = arith.constant 0 : index
    %55 = vector.load %arg6[%c64, %c0_17] : memref<72x256xf32, #tpu.memory_space<vmem>>, vector<8x256xf32>
    tpu.vector_store %arg6[%c64, %c0_17], %54 {strides = array<i32>} : memref<72x256xf32, #tpu.memory_space<vmem>>, vector<8x256xf32>,
    %c0_18 = arith.constant 0 : index
    %c0_19 = arith.constant 0 : index
    %56 = vector.load %arg6[%c0_18, %c0_19] : memref<72x256xf32, #tpu.memory_space<vmem>>, vector<72x256xf32>
    %cst_20 = arith.constant dense<0.000000e+00> : vector<8x256xf32>
    %57 = tpu.matmul %0, %56, %cst_20 {dimension_numbers = #tpu.dot_dimension_numbers<[1], [0], [0], [1], [0, 0, 1, 1], [], []>} : vector<8x72xf32>, vector<72x256xf32>, vector<8x256xf32> -> vector<8x256xf32>
    %58 = vector.broadcast %1 : vector<8x1xf32> to vector<8x256xf32>
    %59 = arith.addf %57, %58 : vector<8x256xf32>
    %c0_21 = arith.constant 0 : index
    %c0_22 = arith.constant 0 : index
    %c0_23 = arith.constant 0 : index
    %60 = vector.load %arg5[%c0_21, %c0_22, %c0_23] : memref<1x8x256xf32, #tpu.memory_space<vmem>>, vector<1x8x256xf32>
    %61 = vector.shape_cast %60 : vector<1x8x256xf32> to vector<8x256xf32>
    %62 = vector.shape_cast %59 : vector<8x256xf32> to vector<1x8x256xf32>
    tpu.vector_store %arg5[%c0_21, %c0_22, %c0_23], %62 {strides = array<i32>} : memref<1x8x256xf32, #tpu.memory_space<vmem>>, vector<1x8x256xf32>,
    return
  }
  func.func @transform_0(%arg0: i32) -> (i32, i32, i32) {
    %c0_i32 = arith.constant 0 : i32
    %c0_i32_0 = arith.constant 0 : i32
    %c0_i32_1 = arith.constant 0 : i32
    return %arg0, %c0_i32, %c0_i32_0 : i32, i32, i32
  }
  func.func @transform_1(%arg0: i32) -> (i32, i32) {
    %c0_i32 = arith.constant 0 : i32
    %c0_i32_0 = arith.constant 0 : i32
    %c0_i32_1 = arith.constant 0 : i32
    return %c0_i32, %c0_i32_0 : i32, i32
  }
  func.func @transform_2(%arg0: i32) -> (i32, i32) {
    %c0_i32 = arith.constant 0 : i32
    %c0_i32_0 = arith.constant 0 : i32
    %c0_i32_1 = arith.constant 0 : i32
    return %c0_i32, %c0_i32_0 : i32, i32
  }
  func.func @transform_3(%arg0: i32) -> (i32, i32) {
    %c0_i32 = arith.constant 0 : i32
    %c0_i32_0 = arith.constant 0 : i32
    %c0_i32_1 = arith.constant 0 : i32
    return %c0_i32, %c0_i32_0 : i32, i32
  }
  func.func @transform_4(%arg0: i32) -> (i32, i32, i32) {
    %c0_i32 = arith.constant 0 : i32
    %c0_i32_0 = arith.constant 0 : i32
    %c0_i32_1 = arith.constant 0 : i32
    return %arg0, %c0_i32, %c0_i32_0 : i32, i32, i32
  }
}

</mosaic_0001>

<llo_original>
// kernel: tpu_custom_call.1
$region0: #{tpu_custom_call.1}
  #allocation0 [shape = 'u32[]', space=smem, size = 0x4, offset = 0x4, fixed_abs, tag = 'smem constant byte address 0x4 - core index']
  #allocation1 [shape = 'u32[144,128]{1,0:T(1,128)}', space=vmem, size = 0x12000, scoped, tag = 'internal scratch']
  #allocation2 [shape = 'f32[72,256]{1,0:T(8,128)}', space=vmem, size = 0x12000, scoped, tag = 'scratch operand']
  %s0 = inlined_call_operand.hbm [shape: f32[2,4,256], index: 0, kind: input, shape index: {}]
  %s1 = inlined_call_operand.vmem [shape: f32[8,72], index: 1, kind: input, shape index: {}]
  %s2 = inlined_call_operand.vmem [shape: f32[8,1], index: 2, kind: input, shape index: {}]
  %s3 = inlined_call_operand.hbm [shape: f32[9,256], index: 3, kind: input, shape index: {}]
  %s4 = inlined_call_operand.hbm [shape: f32[2,8,256], index: 4, kind: output, shape index: {}]
  %s5 = sld [smem:[#allocation0]]
  $region57: #{tpu_custom_call.1} parent=0
    _
  %s7 = ssub.s32 1, %s5
  %s8 = scalar_select 0, %s7, %s5
  $region1: #{tpu_custom_call.1} parent=0
    #allocation3 [shape = 'u8[8192]{0}', space=vmem, size = 0x2000, scoped, tag = 'input window, operand 0']
    #allocation4 [shape = 's32[2]{0}', space=sflag, size = 0x8, scoped, tag = 'scoped memory for tpu_custom_call.1']
    #allocation5 [shape = 's32[2]{0}', space=sflag, size = 0x8, scoped, tag = 'scoped memory for tpu_custom_call.1']
    #allocation6 [shape = 'u8[16384]{0}', space=vmem, size = 0x4000, scoped, tag = 'input window, operand 3, single buffered']
    #allocation7 [shape = 's32[1]{0}', space=sflag, size = 0x4, scoped, tag = 'scoped memory for tpu_custom_call.1']
    #allocation8 [shape = 'u8[16384]{0}', space=vmem, size = 0x4000, scoped, tag = 'output window, operand 0']
    %9 = vsyncpa [#allocation4], 0
    %s10 = scalar_lea.sflag [#allocation4], 1
    %11 = vsyncpa %s10, 0
    %12 = vsyncpa [#allocation7], 0
    %13 = vsyncpa [#allocation5], 0
    %s14 = scalar_lea.sflag [#allocation5], 1
    %15 = vsyncpa %s14, 0
    loop: start=0, step=1, limit=4
    $region2: #{tpu_custom_call.1} parent=1 // loop_pre_header
      _
    $region3: #{tpu_custom_call.1} parent=1 // loop_header
      %s17 = sphi 0, %s21
      %p18 = scmp.ge.s32.totalorder %s17, 4
      %s27 = sphi 0, %s29
      %s30 = sphi 0, %s27
      %s31 = sphi 0, %s30
      %s47 = sphi 0, %s31
      %s51 = sphi 0, %s51
      %s53 = sphi 0, %s51
      %s54 = sphi 0, %s53
      %s68 = sphi 0, %s54
      %s72 = sphi 0, %s72
      %s74 = sphi 0, %s72
      %s75 = sphi 0, %s74
      %s89 = sphi 0, %s75
      %s93 = sphi 0, %s93
      %s95 = sphi 0, %s93
      %s96 = sphi 0, %s95
      %s110 = sphi 0, %s96
      %s116 = sphi 0, %s118
      %s119 = sphi 0, %s116
      %s120 = sphi 0, %s119
      %s136 = sphi 0, %s120
    $region4: #{tpu_custom_call.1} parent=1 // loop_header_branch
      %20 = sbr.rel (%p18) target = $region8
    $region5: #{tpu_custom_call.1} parent=1 // loop_body
      %s22 = ssub.s32 %s17, 1
      %s23 = ssub.s32 %s17, 2
      %s24 = sadd.s32 %s17, 1
      %s25 = ssub.s32 %s17, %s24
      %p26 = scmp.eq.s32.totalorder %s25, 0
      %s28 = sadd.s32 %s27, 1
      %s29 = scalar_select %p26, %s27, %s28
      %p32 = pneg %p26
      %p33 = scmp.eq.s32.totalorder %s17, 1
      %p34 = por %p32, %p33
      %p35 = scmp.ne.s32.totalorder %s27, %s30
      %p36 = scmp.eq.s32.totalorder %s17, 0
      %p37 = por %p35, %p36
      %p38 = scmp.ne.s32.totalorder %s27, %s30
      %p39 = scmp.eq.s32.totalorder %s22, 1
      %p40 = por %p38, %p39
      %p41 = scmp.ne.s32.totalorder %s30, %s31
      %p42 = scmp.eq.s32.totalorder %s22, 0
      %p43 = por %p41, %p42
      %p44 = scmp.ne.s32.totalorder %s30, %s31
      %p45 = scmp.eq.s32.totalorder %s23, 1
      %p46 = por %p44, %p45
      %p48 = scmp.ne.s32.totalorder %s31, %s47
      %p49 = scmp.eq.s32.totalorder %s23, 0
      %p50 = por %p48, %p49
      %s52 = sadd.s32 %s51, 1
      %p55 = scmp.eq.s32.totalorder %s17, 1
      %p56 = scmp.ne.s32.totalorder %s51, %s53
      %p57 = scmp.eq.s32.totalorder %s17, 0
      %p58 = por %p56, %p57
      %p59 = scmp.ne.s32.totalorder %s51, %s53
      %p60 = scmp.eq.s32.totalorder %s22, 1
      %p61 = por %p59, %p60
      %p62 = scmp.ne.s32.totalorder %s53, %s54
      %p63 = scmp.eq.s32.totalorder %s22, 0
      %p64 = por %p62, %p63
      %p65 = scmp.ne.s32.totalorder %s53, %s54
      %p66 = scmp.eq.s32.totalorder %s23, 1
      %p67 = por %p65, %p66
      %p69 = scmp.ne.s32.totalorder %s54, %s68
      %p70 = scmp.eq.s32.totalorder %s23, 0
      %p71 = por %p69, %p70
      %s73 = sadd.s32 %s72, 1
      %p76 = scmp.eq.s32.totalorder %s17, 1
      %p77 = scmp.ne.s32.totalorder %s72, %s74
      %p78 = scmp.eq.s32.totalorder %s17, 0
      %p79 = por %p77, %p78
      %p80 = scmp.ne.s32.totalorder %s72, %s74
      %p81 = scmp.eq.s32.totalorder %s22, 1
      %p82 = por %p80, %p81
      %p83 = scmp.ne.s32.totalorder %s74, %s75
      %p84 = scmp.eq.s32.totalorder %s22, 0
      %p85 = por %p83, %p84
      %p86 = scmp.ne.s32.totalorder %s74, %s75
      %p87 = scmp.eq.s32.totalorder %s23, 1
      %p88 = por %p86, %p87
      %p90 = scmp.ne.s32.totalorder %s75, %s89
      %p91 = scmp.eq.s32.totalorder %s23, 0
      %p92 = por %p90, %p91
      %s94 = sadd.s32 %s93, 1
      %p97 = scmp.eq.s32.totalorder %s17, 1
      %p98 = scmp.ne.s32.totalorder %s93, %s95
      %p99 = scmp.eq.s32.totalorder %s17, 0
      %p100 = por %p98, %p99
      %p101 = scmp.ne.s32.totalorder %s93, %s95
      %p102 = scmp.eq.s32.totalorder %s22, 1
      %p103 = por %p101, %p102
      %p104 = scmp.ne.s32.totalorder %s95, %s96
      %p105 = scmp.eq.s32.totalorder %s22, 0
      %p106 = por %p104, %p105
      %p107 = scmp.ne.s32.totalorder %s95, %s96
      %p108 = scmp.eq.s32.totalorder %s23, 1
      %p109 = por %p107, %p108
      %p111 = scmp.ne.s32.totalorder %s96, %s110
      %p112 = scmp.eq.s32.totalorder %s23, 0
      %p113 = por %p111, %p112
      %s114 = ssub.s32 %s17, %s24
      %p115 = scmp.eq.s32.totalorder %s114, 0
      %s117 = sadd.s32 %s116, 1
      %s118 = scalar_select %p115, %s116, %s117
      %p121 = pneg %p115
      %p122 = scmp.eq.s32.totalorder %s17, 1
      %p123 = por %p121, %p122
      %p124 = scmp.ne.s32.totalorder %s116, %s119
      %p125 = scmp.eq.s32.totalorder %s17, 0
      %p126 = por %p124, %p125
      %p127 = scmp.ne.s32.totalorder %s116, %s119
      %p128 = scmp.eq.s32.totalorder %s22, 1
      %p129 = por %p127, %p128
      %p130 = scmp.ne.s32.totalorder %s119, %s120
      %p131 = scmp.eq.s32.totalorder %s22, 0
      %p132 = por %p130, %p131
      %p133 = scmp.ne.s32.totalorder %s119, %s120
      %p134 = scmp.eq.s32.totalorder %s23, 1
      %p135 = por %p133, %p134
      %p137 = scmp.ne.s32.totalorder %s120, %s136
      %p138 = scmp.eq.s32.totalorder %s23, 0
      %p139 = por %p137, %p138
      %p140 = scmp.le.s32.totalorder 1, %s17
      %p141 = scmp.lt.s32.totalorder %s17, 3
      %p142 = pnand %p140, %p141
      %p143 = pneg %p142
      // Predicated region
      $region9: #{tpu_custom_call.1} parent=5 // pred_check
        _
      $region10: #{tpu_custom_call.1} parent=5 // pred_check_branch
        %145 = sbr.rel (%p142) target = $region12
      $region11: #{tpu_custom_call.1} parent=5 // pred_region
        %s146 = ssub.s32 %s17, 1
        // Predicated region
        $region13: #{tpu_custom_call.1} parent=11 // pred_check
          %p147 = pneg %p64
        $region14: #{tpu_custom_call.1} parent=11 // pred_check_branch
          %149 = sbr.rel (%p147) target = $region16
        $region15: #{tpu_custom_call.1} parent=11 // pred_region
          _
        $region16: #{tpu_custom_call.1} parent=11 // pred_fallthru
          _
        // Predicated region
        $region17: #{tpu_custom_call.1} parent=11 // pred_check
          %p150 = pneg %p85
        $region18: #{tpu_custom_call.1} parent=11 // pred_check_branch
          %152 = sbr.rel (%p150) target = $region20
        $region19: #{tpu_custom_call.1} parent=11 // pred_region
          _
        $region20: #{tpu_custom_call.1} parent=11 // pred_fallthru
          _
        // Predicated region
        $region21: #{tpu_custom_call.1} parent=11 // pred_check
          %p153 = pneg %p106
        $region22: #{tpu_custom_call.1} parent=11 // pred_check_branch
          %155 = sbr.rel (%p153) target = $region24
        $region23: #{tpu_custom_call.1} parent=11 // pred_region
          %s157 = ssub.s32 512, 512
          %158 = vsyncadd [#allocation7], %s157
          %s159 = sshll.u32 [#allocation6], 4
          %s160 = int_to_ptr.vmem [resolvable:$true] %s159
          %165 = dma.hbm_to_vmem [thread:$0]  %s3, 512, %s160, [#allocation7], 256, 256, 16
        $region24: #{tpu_custom_call.1} parent=11 // pred_fallthru
          _
      $region12: #{tpu_custom_call.1} parent=5 // pred_fallthru
        _
      %p166 = scmp.lt.s32.totalorder %s17, 2
      // Predicated region
      $region25: #{tpu_custom_call.1} parent=5 // pred_check
        %p167 = pneg %p166
      $region26: #{tpu_custom_call.1} parent=5 // pred_check_branch
        %169 = sbr.rel (%p167) target = $region28
      $region27: #{tpu_custom_call.1} parent=5 // pred_region
        // Predicated region
        $region29: #{tpu_custom_call.1} parent=27 // pred_check
          %p170 = pneg %p37
        $region30: #{tpu_custom_call.1} parent=27 // pred_check_branch
          %172 = sbr.rel (%p170) target = $region32
        $region31: #{tpu_custom_call.1} parent=27 // pred_region
          %s173 = sand.u32 %s27, 1
          %s174 = scalar_lea.sflag [#allocation4], %s173
          %s175 = sand.u32 %s27, 1
          %s176 = smul.addr %s175, 8
          %s177 = scalar_lea.vmem [#allocation3], %s176
          %s179 = ssub.s32 128, 128
          %180 = vsyncadd %s174, %s179
          %s181 = smul.addr %s17, 2
          %s182 = smul.addr %s181, 64
          %s183 = scalar_lea.hbm %s0, %s182
          %s185 = sshll.u32 %s177, 4
          %s186 = int_to_ptr.vmem [resolvable:$true] %s185
          %188 = dma.hbm_to_vmem [thread:$0]  %s183, 128, %s186, %s174
        $region32: #{tpu_custom_call.1} parent=27 // pred_fallthru
          _
      $region28: #{tpu_custom_call.1} parent=5 // pred_fallthru
        _
      %p189 = scmp.le.s32.totalorder 1, %s17
      %p190 = scmp.lt.s32.totalorder %s17, 3
      %p191 = pnand %p189, %p190
      %p192 = pneg %p191
      // Predicated region
      $region33: #{tpu_custom_call.1} parent=5 // pred_check
        _
      $region34: #{tpu_custom_call.1} parent=5 // pred_check_branch
        %194 = sbr.rel (%p191) target = $region36
      $region35: #{tpu_custom_call.1} parent=5 // pred_region
        %s195 = ssub.s32 %s17, 1
        %s196 = sand.u32 %s30, 1
        %s197 = scalar_lea.sflag [#allocation4], %s196
        %s198 = sand.u32 %s30, 1
        %s199 = smul.addr %s198, 8
        %s200 = scalar_lea.vmem [#allocation3], %s199
        // Predicated region
        $region37: #{tpu_custom_call.1} parent=35 // pred_check
          %p201 = pneg %p43
        $region38: #{tpu_custom_call.1} parent=35 // pred_check_branch
          %203 = sbr.rel (%p201) target = $region40
        $region39: #{tpu_custom_call.1} parent=35 // pred_region
          %204 = dma.done %s197, 128
        $region40: #{tpu_custom_call.1} parent=35 // pred_fallthru
          _
        // Predicated region
        $region41: #{tpu_custom_call.1} parent=35 // pred_check
          %p205 = pneg %p106
        $region42: #{tpu_custom_call.1} parent=35 // pred_check_branch
          %207 = sbr.rel (%p205) target = $region44
        $region43: #{tpu_custom_call.1} parent=35 // pred_region
          %208 = dma.done [#allocation7], 512
        $region44: #{tpu_custom_call.1} parent=35 // pred_fallthru
          _
        %s209 = sand.u32 %s30, 1
        %s210 = scalar_lea.sflag [#allocation4], %s209
        %s211 = sand.u32 %s30, 1
        %s212 = smul.addr %s211, 8
        %s213 = scalar_lea.vmem [#allocation3], %s212
        %p214 = pneg %p43
        %p215 = pneg %p40
        %p216 = pneg %p64
        %p217 = pneg %p61
        %p218 = pneg %p85
        %p219 = pneg %p82
        %p220 = pneg %p106
        %p221 = pneg %p103
        %p222 = pneg %p132
        %p223 = pneg %p129
        %s224 = sand.u32 %s119, 1
        %s225 = scalar_lea.sflag [#allocation5], %s224
        %s226 = sand.u32 %s119, 1
        %s227 = smul.addr %s226, 16
        %s228 = scalar_lea.vmem [#allocation8], %s227
        %v229 = vld [vmem:[%s1] sm:$0xff]
        %v230 = vld [vmem:[%s2] sm:$0xff]
        %v231 = vld [vmem:[#allocation6] sm:$0xff]
        %v232 = vld [vmem:[#allocation6 + $0x8] sm:$0xff]
        %v233 = vld [vmem:[#allocation6 + $0x10] sm:$0x1]
        %v234 = vld [vmem:[#allocation6 + $0x18] sm:$0x1]
        %v235 = vld [vmem:[%s200] sm:$0xff]
        %v237 = vcombine.high %v235, %v235
        %239 = vrot.lane.b32.xlu0 %v235, 17
        %v240 = vpop.permute.xlu0 %239
        %241 = vrot.lane.b32.xlu0 %v237, 17
        %v242 = vpop.permute.xlu0 %241
        %v243 = vlaneseq
        %v244 = vand.u32 %v243, 127
        %vm245 = vcmp.lt.s32.totalorder %v244, 17
        %v246 = vsel %vm245, %v240, %v242
        %v247 = vsel %vm245, %v242, %v240
        %v248 = vlaneseq
        %v249 = vshrl.u32 %v248, 7
        %v250 = vsub.s32 0, %v249
        %v251 = vrot.slane %v231, %v250
        %v252 = vlaneseq
        %v253 = vshrl.u32 %v252, 7
        %v254 = vsub.s32 0, %v253
        %v255 = vrot.slane %v232, %v254
        %v256 = vmul.f32 %v247, %v251
        %v257 = vmul.f32 %v246, %v255
        %vm258 = vcmask 1043456
        %v259 = vsel %vm258, %v256, 0.0
        %v260 = vsel %vm258, %v257, 0.0
        %261 = vst [vmem:[#allocation2] sm:$0xff] %v259
        %262 = vst [vmem:[#allocation2 + $0x8] sm:$0xff] %v260
        %263 = vrot.lane.b32.xlu0 %v235, 16
        %v264 = vpop.permute.xlu0 %263
        %265 = vrot.lane.b32.xlu0 %v237, 16
        %v266 = vpop.permute.xlu0 %265
        %vm267 = vcmp.lt.s32.totalorder %v244, 16
        %v268 = vsel %vm267, %v264, %v266
        %v269 = vsel %vm267, %v266, %v264
        %v270 = vlaneseq
        %v271 = vshrl.u32 %v270, 7
        %v272 = vsub.s32 1, %v271
        %v273 = vrot.slane %v231, %v272
        %v274 = vlaneseq
        %v275 = vshrl.u32 %v274, 7
        %v276 = vsub.s32 1, %v275
        %v277 = vrot.slane %v232, %v276
        %v278 = vmul.f32 %v269, %v273
        %v279 = vmul.f32 %v268, %v277
        %v280 = vsel %vm258, %v278, 0.0
        %v281 = vsel %vm258, %v279, 0.0
        %282 = vst [vmem:[#allocation2 + $0x10] sm:$0xff] %v280
        %283 = vst [vmem:[#allocation2 + $0x18] sm:$0xff] %v281
        %284 = vrot.lane.b32.xlu0 %v235, 15
        %v285 = vpop.permute.xlu0 %284
        %286 = vrot.lane.b32.xlu0 %v237, 15
        %v287 = vpop.permute.xlu0 %286
        %vm288 = vcmp.lt.s32.totalorder %v244, 15
        %v289 = vsel %vm288, %v285, %v287
        %v290 = vsel %vm288, %v287, %v285
        %v291 = vlaneseq
        %v292 = vshrl.u32 %v291, 7
        %v293 = vsub.s32 2, %v292
        %v294 = vrot.slane %v231, %v293
        %v295 = vlaneseq
        %v296 = vshrl.u32 %v295, 7
        %v297 = vsub.s32 2, %v296
        %v298 = vrot.slane %v232, %v297
        %v299 = vmul.f32 %v290, %v294
        %v300 = vmul.f32 %v289, %v298
        %v301 = vsel %vm258, %v299, 0.0
        %v302 = vsel %vm258, %v300, 0.0
        %303 = vst [vmem:[#allocation2 + $0x20] sm:$0xff] %v301
        %304 = vst [vmem:[#allocation2 + $0x28] sm:$0xff] %v302
        %305 = vrot.lane.b32.xlu0 %v235, 1
        %v306 = vpop.permute.xlu0 %305
        %307 = vrot.lane.b32.xlu0 %v237, 1
        %v308 = vpop.permute.xlu0 %307
        %vm309 = vcmp.lt.s32.totalorder %v244, 1
        %v310 = vsel %vm309, %v306, %v308
        %v311 = vsel %vm309, %v308, %v306
        %v312 = vlaneseq
        %v313 = vshrl.u32 %v312, 7
        %v314 = vsub.s32 3, %v313
        %v315 = vrot.slane %v231, %v314
        %v316 = vlaneseq
        %v317 = vshrl.u32 %v316, 7
        %v318 = vsub.s32 3, %v317
        %v319 = vrot.slane %v232, %v318
        %v320 = vmul.f32 %v311, %v315
        %v321 = vmul.f32 %v310, %v319
        %v322 = vsel %vm258, %v320, 0.0
        %v323 = vsel %vm258, %v321, 0.0
        %324 = vst [vmem:[#allocation2 + $0x30] sm:$0xff] %v322
        %325 = vst [vmem:[#allocation2 + $0x38] sm:$0xff] %v323
        %v326 = vsel %vm258, %v235, 0.0
        %v327 = vsel %vm258, %v237, 0.0
        %328 = vst [vmem:[#allocation2 + $0x40] sm:$0xff] %v326
        %329 = vst [vmem:[#allocation2 + $0x48] sm:$0xff] %v327
        %330 = vrot.lane.b32.xlu0 %v235, 127
        %v331 = vpop.permute.xlu0 %330
        %332 = vrot.lane.b32.xlu0 %v237, 127
        %v333 = vpop.permute.xlu0 %332
        %vm334 = vcmp.lt.s32.totalorder %v244, 127
        %v335 = vsel %vm334, %v331, %v333
        %v336 = vsel %vm334, %v333, %v331
        %v337 = vlaneseq
        %v338 = vshrl.u32 %v337, 7
        %v339 = vsub.s32 5, %v338
        %v340 = vrot.slane %v231, %v339
        %v341 = vlaneseq
        %v342 = vshrl.u32 %v341, 7
        %v343 = vsub.s32 5, %v342
        %v344 = vrot.slane %v232, %v343
        %v345 = vmul.f32 %v335, %v340
        %v346 = vmul.f32 %v336, %v344
        %v347 = vsel %vm258, %v345, 0.0
        %v348 = vsel %vm258, %v346, 0.0
        %349 = vst [vmem:[#allocation2 + $0x50] sm:$0xff] %v347
        %350 = vst [vmem:[#allocation2 + $0x58] sm:$0xff] %v348
        %351 = vrot.lane.b32.xlu0 %v235, 113
        %v352 = vpop.permute.xlu0 %351
        %353 = vrot.lane.b32.xlu0 %v237, 113
        %v354 = vpop.permute.xlu0 %353
        %vm355 = vcmp.lt.s32.totalorder %v244, 113
        %v356 = vsel %vm355, %v352, %v354
        %v357 = vsel %vm355, %v354, %v352
        %v358 = vlaneseq
        %v359 = vshrl.u32 %v358, 7
        %v360 = vsub.s32 6, %v359
        %v361 = vrot.slane %v231, %v360
        %v362 = vlaneseq
        %v363 = vshrl.u32 %v362, 7
        %v364 = vsub.s32 6, %v363
        %v365 = vrot.slane %v232, %v364
        %v366 = vmul.f32 %v356, %v361
        %v367 = vmul.f32 %v357, %v365
        %v368 = vsel %vm258, %v366, 0.0
        %v369 = vsel %vm258, %v367, 0.0
        %370 = vst [vmem:[#allocation2 + $0x60] sm:$0xff] %v368
        %371 = vst [vmem:[#allocation2 + $0x68] sm:$0xff] %v369
        %372 = vrot.lane.b32.xlu0 %v235, 112
        %v373 = vpop.permute.xlu0 %372
        %374 = vrot.lane.b32.xlu0 %v237, 112
        %v375 = vpop.permute.xlu0 %374
        %vm376 = vcmp.lt.s32.totalorder %v244, 112
        %v377 = vsel %vm376, %v373, %v375
        %v378 = vsel %vm376, %v375, %v373
        %v379 = vlaneseq
        %v380 = vshrl.u32 %v379, 7
        %v381 = vsub.s32 7, %v380
        %v382 = vrot.slane %v231, %v381
        %v383 = vlaneseq
        %v384 = vshrl.u32 %v383, 7
        %v385 = vsub.s32 7, %v384
        %v386 = vrot.slane %v232, %v385
        %v387 = vmul.f32 %v377, %v382
        %v388 = vmul.f32 %v378, %v386
        %v389 = vsel %vm258, %v387, 0.0
        %v390 = vsel %vm258, %v388, 0.0
        %391 = vst [vmem:[#allocation2 + $0x70] sm:$0xff] %v389
        %392 = vst [vmem:[#allocation2 + $0x78] sm:$0xff] %v390
        %393 = vrot.lane.b32.xlu0 %v235, 111
        %v394 = vpop.permute.xlu0 %393
        %395 = vrot.lane.b32.xlu0 %v237, 111
        %v396 = vpop.permute.xlu0 %395
        %vm397 = vcmp.lt.s32.totalorder %v244, 111
        %v398 = vsel %vm397, %v394, %v396
        %v399 = vsel %vm397, %v396, %v394
        %v400 = vlaneseq
        %v401 = vshrl.u32 %v400, 7
        %v402 = vsub.s32 0, %v401
        %v403 = vrot.slane %v233, %v402
        %v404 = vlaneseq
        %v405 = vshrl.u32 %v404, 7
        %v406 = vsub.s32 0, %v405
        %v407 = vrot.slane %v234, %v406
        %v408 = vmul.f32 %v398, %v403
        %v409 = vmul.f32 %v399, %v407
        %v410 = vsel %vm258, %v408, 0.0
        %v411 = vsel %vm258, %v409, 0.0
        %412 = vst [vmem:[#allocation2 + $0x80] sm:$0xff] %v410
        %413 = vst [vmem:[#allocation2 + $0x88] sm:$0xff] %v411
        %v414 = vld [vmem:[#allocation2] sm:$0xff]
        %v415 = vld [vmem:[#allocation2 + $0x8] sm:$0xff]
        %v416 = vld [vmem:[#allocation2 + $0x10] sm:$0xff]
        %v417 = vld [vmem:[#allocation2 + $0x18] sm:$0xff]
        %v418 = vld [vmem:[#allocation2 + $0x20] sm:$0xff]
        %v419 = vld [vmem:[#allocation2 + $0x28] sm:$0xff]
        %v420 = vld [vmem:[#allocation2 + $0x30] sm:$0xff]
        %v421 = vld [vmem:[#allocation2 + $0x38] sm:$0xff]
        %v422 = vld [vmem:[#allocation2 + $0x40] sm:$0xff]
        %v423 = vld [vmem:[#allocation2 + $0x48] sm:$0xff]
        %v424 = vld [vmem:[#allocation2 + $0x50] sm:$0xff]
        %v425 = vld [vmem:[#allocation2 + $0x58] sm:$0xff]
        %v426 = vld [vmem:[#allocation2 + $0x60] sm:$0xff]
        %v427 = vld [vmem:[#allocation2 + $0x68] sm:$0xff]
        %v428 = vld [vmem:[#allocation2 + $0x70] sm:$0xff]
        %v429 = vld [vmem:[#allocation2 + $0x78] sm:$0xff]
        %v430 = vld [vmem:[#allocation2 + $0x80] sm:$0xff]
        %v431 = vld [vmem:[#allocation2 + $0x88] sm:$0xff]
        %433 = vset.pattern.permute.xlu0 0
        %434 = vperm.xlu0 %433, %v230
        %v435 = vpop.permute.xlu0 %434
        %vm437 = vcmask 588800
        %v439 = vsel %vm437, %v229, 0
        %441 = vmatprep.subr.mxu0 %v415
        %442 = vmatpush1.msra.mxu0 %v414
        %443 = vmatprep.subr.mxu0 %v417
        %444 = vmatpush1.msra.mxu0 %v416
        %445 = vmatprep.subr.mxu0 %v419
        %446 = vmatpush1.msra.mxu0 %v418
        %447 = vmatprep.subr.mxu0 %v421
        %448 = vmatpush1.msra.mxu0 %v420
        %449 = vmatprep.subr.mxu0 %v423
        %450 = vmatpush1.msra.mxu0 %v422
        %451 = vmatprep.subr.mxu0 %v425
        %452 = vmatpush1.msra.mxu0 %v424
        %453 = vmatprep.subr.mxu0 %v427
        %454 = vmatpush1.msra.mxu0 %v426
        %455 = vmatprep.subr.mxu0 %v429
        %456 = vmatpush1.msra.mxu0 %v428
        %457 = vmatprep.subr.mxu0 %v431
        %458 = vmatpush1.msra.mxu0 %v430
        %459 = vmatprep.subr.mxu0 0.0
        %460 = vmatpush1.msra.mxu0 0.0
        %461 = vmatprep.subr.mxu0 0.0
        %462 = vmatpush1.msra.mxu0 0.0
        %463 = vmatprep.subr.mxu0 0.0
        %464 = vmatpush1.msra.mxu0 0.0
        %465 = vmatprep.subr.mxu0 0.0
        %466 = vmatpush1.msra.mxu0 0.0
        %467 = vmatprep.subr.mxu0 0.0
        %468 = vmatpush1.msra.mxu0 0.0
        %469 = vmatprep.subr.mxu0 0.0
        %470 = vmatpush1.msra.mxu0 0.0
        %471 = vmatprep.subr.mxu0 0.0
        %472 = vmatpush1.msra.mxu0 0.0
        %473 = vmatprep.subr.mxu0 0.0
        %474 = vmatpush1.msra.mxu0 0.0
        %475 = vmatprep.subr.mxu0 0.0
        %476 = vmatpush1.msra.mxu0 0.0
        %477 = vmatprep.subr.mxu0 0.0
        %478 = vmatpush1.msra.mxu0 0.0
        %479 = vmatprep.subr.mxu0 0.0
        %480 = vmatpush1.msra.mxu0 0.0
        %481 = vmatprep.subr.mxu0 0.0
        %482 = vmatpush1.msra.mxu0 0.0
        %483 = vmatprep.subr.mxu0 0.0
        %484 = vmatpush1.msra.mxu0 0.0
        %485 = vmatprep.subr.mxu0 0.0
        %486 = vmatpush1.msra.mxu0 0.0
        %487 = vmatprep.subr.mxu0 0.0
        %488 = vmatpush1.msra.mxu0 0.0
        %489 = vmatprep.subr.mxu0 0.0
        %490 = vmatpush1.msra.mxu0 0.0
        %491 = vmatprep.subr.mxu0 0.0
        %492 = vmatpush1.msra.mxu0 0.0
        %493 = vmatprep.subr.mxu0 0.0
        %494 = vmatpush1.msra.mxu0 0.0
        %495 = vmatprep.subr.mxu0 0.0
        %496 = vmatpush1.msra.mxu0 0.0
        %497 = vmatprep.subr.mxu0 0.0
        %498 = vmatpush1.msra.mxu0 0.0
        %499 = vmatprep.subr.mxu0 0.0
        %500 = vmatpush1.msra.mxu0 0.0
        %501 = vmatprep.subr.mxu0 0.0
        %502 = vmatpush1.msra.mxu0 0.0
        %503 = vmatprep.subr.mxu0 0.0
        %504 = vmatpush1.msra.mxu0 0.0
        %505 = vmatprep.mubr.f32.mxu0 0.0
        %506 = vmatmul.mubr.f32.gmra.mrb[0].mxu0 %v439
        %v507 = vpop.f32.mrb[0].mxu0
        %v508 = vadd.f32 %v435, %v507
        %v509 = vpop.f32.mrb[0].mxu0
        %v510 = vadd.f32 %v435, %v509
        %511 = vdwg.mxu0
        %512 = vst [vmem:[%s228] sm:$0xff] %v508
        %513 = vst [vmem:[%s228 + $0x8] sm:$0xff] %v510
        %s514 = sand.u32 %s119, 1
        %s515 = scalar_lea.sflag [#allocation5], %s514
        %s516 = sand.u32 %s119, 1
        %s517 = smul.addr %s516, 16
        %s518 = scalar_lea.vmem [#allocation8], %s517
        // Predicated region
        $region45: #{tpu_custom_call.1} parent=35 // pred_check
          %p519 = pneg %p129
        $region46: #{tpu_custom_call.1} parent=35 // pred_check_branch
          %521 = sbr.rel (%p519) target = $region48
        $region47: #{tpu_custom_call.1} parent=35 // pred_region
          %s523 = ssub.s32 256, 256
          %524 = vsyncadd %s515, %s523
          %s525 = smul.addr %s22, 2
          %s526 = smul.addr %s525, 128
          %s527 = scalar_lea.hbm %s4, %s526
          %s529 = sshll.u32 %s518, 4
          %s530 = int_to_ptr.vmem [resolvable:$true] %s529
          %532 = dma.vmem_to_hbm [thread:$0]  %s530, 256, %s527, %s515
        $region48: #{tpu_custom_call.1} parent=35 // pred_fallthru
          _
      $region36: #{tpu_custom_call.1} parent=5 // pred_fallthru
        _
      %p533 = scmp.le.s32.totalorder 2, %s17
      // Predicated region
      $region49: #{tpu_custom_call.1} parent=5 // pred_check
        %p534 = pneg %p533
      $region50: #{tpu_custom_call.1} parent=5 // pred_check_branch
        %536 = sbr.rel (%p534) target = $region52
      $region51: #{tpu_custom_call.1} parent=5 // pred_region
        %s537 = ssub.s32 %s17, 2
        // Predicated region
        $region53: #{tpu_custom_call.1} parent=51 // pred_check
          %p538 = pneg %p135
        $region54: #{tpu_custom_call.1} parent=51 // pred_check_branch
          %540 = sbr.rel (%p538) target = $region56
        $region55: #{tpu_custom_call.1} parent=51 // pred_region
          %s541 = sand.u32 %s120, 1
          %s542 = scalar_lea.sflag [#allocation5], %s541
          %s543 = sand.u32 %s120, 1
          %s544 = smul.addr %s543, 16
          %s545 = scalar_lea.vmem [#allocation8], %s544
          %546 = dma.done %s542, 256
        $region56: #{tpu_custom_call.1} parent=51 // pred_fallthru
          _
      $region52: #{tpu_custom_call.1} parent=5 // pred_fallthru
        _
    $region6: #{tpu_custom_call.1} parent=1 // loop_footer
      %s21 = sadd.s32 1, %s17
    $region7: #{tpu_custom_call.1} parent=1 // loop_footer_branch
      %16 = sbr.rel target = $region3
    $region8: #{tpu_custom_call.1} parent=1 // loop_exit
      _
    %547 = vsyncpa [#allocation4], 1
    %s548 = scalar_lea.sflag [#allocation4], 1
    %549 = vsyncpa %s548, 1
    %550 = vsyncpa [#allocation7], 1
    %551 = vsyncpa [#allocation5], 1
    %s552 = scalar_lea.sflag [#allocation5], 1
    %553 = vsyncpa %s552, 1

</llo_original>
